<compile_context>
chip_gen: v5e
topology: v5e:2x2
jax: 0.10.0
libtpu: 0.0.40
codegen_flags: <defaults>
</compile_context>

<pallas_src>
from functools import partial

import jax
import jax.numpy as jnp
import numpy as np
from jax.experimental import pallas as pl
from jax.experimental.pallas import tpu as pltpu


def sa_kernel(local_ref, gc_ref, wlt_ref, bl_ref, ng_ref, wout_ref, *,
              l_valid, act_dtype):
    tb, Lp, D = local_ref.shape
    local = local_ref[...]                                       # (tb,Lp,D) bf16

    # l_emb = tanh(local @ Wl^T + bl): one (tb*Lp, D) x (D, D) bf16 MXU matmul
    # with f32 accumulation; tanh in bf16 on v6e/v7x (bf16 EUP), f32 on v5e.
    acc = jnp.dot(local.reshape(tb * Lp, D), wlt_ref[...],
                  preferred_element_type=jnp.float32) + bl_ref[...]
    l_emb = jnp.tanh(acc.astype(act_dtype)).reshape(tb, Lp, D)

    # logits = <l_emb, g_emb * wc> along D (wc folded into gc in the wrapper;
    # the bc bias is a per-row constant and cancels in softmax).
    logits = jnp.sum(l_emb * gc_ref[...][:, None, :], axis=-1)   # (tb, Lp) f32

    if Lp != l_valid:   # mask padded words out of the softmax
        col = jax.lax.broadcasted_iota(jnp.int32, (tb, Lp), 1)
        logits = jnp.where(col < l_valid, logits, -jnp.inf)

    # Softmax over words (lane axis); exact division so weights sum to 1.
    m = jnp.max(logits, axis=-1, keepdims=True)
    e = jnp.exp(logits - m)
    w = e / jnp.sum(e, axis=-1, keepdims=True)                   # (tb, Lp)

    # new_global = sum_L w * local -- VPU multiply + sublane reduce (no TB
    # separate M=1 MXU matmuls); bf16*f32 promotes to f32 in one pass.
    ng = jnp.sum(w[:, :, None] * local, axis=1)                  # (tb, D) f32

    # l2norm: X / (sqrt(sum X^2) + eps)
    sq = jnp.sum(ng * ng, axis=-1, keepdims=True)
    ng_ref[...] = ng / (jnp.sqrt(sq) + 1e-8)
    wout_ref[...] = w


def _tpu_config():
    """(vmem_budget_bytes, vmem_limit_bytes, activation dtype) per generation."""
    kind = ""
    try:
        kind = jax.devices()[0].device_kind.lower()
    except Exception:
        pass
    is_v7 = "7" in kind
    is_old = any(s in kind for s in ("v2", "v3", "v4", "v5"))
    if is_v7:
        # v7x: 64 MiB VMEM per TC -> keep per-step footprint ~20 MiB.
        budget, limit = 20 << 20, 40 << 20
    else:
        # v5e / v6e (128 MiB physical; raise the small scoped default).
        budget, limit = 48 << 20, 96 << 20
    # bf16 tanh only where the EUP/VPU has a bf16 path (v6e / v7x).
    act_dtype = jnp.float32 if is_old else jnp.bfloat16
    return budget, limit, act_dtype


def _choose_batch_tile(B, Lp, D, vmem_budget_bytes):
    # Resident bytes per batch row per grid step (double-buffered inputs/outputs
    # plus f32 temporaries), and fixed weight footprint.
    per_row = (2 * 2 * Lp * D      # local slab, bf16, double-buffered
               + 4 * Lp * D        # l_emb f32 temporary
               + 2 * 4 * D         # gc, f32, double-buffered
               + 2 * 4 * D         # new_global out, double-buffered
               + 2 * 4 * Lp)       # weights out, double-buffered
    fixed = 2 * 2 * D * D + 2 * 4 * D   # Wl^T bf16 (dbl-buf) + bl
    avail = max(vmem_budget_bytes - fixed, 8 * per_row)
    tb = int(avail // per_row) // 8 * 8
    tb = max(8, min(tb, 512))
    if B <= 8:
        return 8
    # Keep >= 2 grid blocks when B allows (v7x megacore sharding + DMA overlap).
    half = -(-B // 2)
    half = max(8, -(-half // 8) * 8)
    return min(tb, half)


def sa_forward(local, raw_global, params, *, batch_tile=None):
    B, L, D = local.shape
    wl, bl, wg, bg, wc, bc = params
    del bc  # per-row constant; cancels in softmax

    budget, vmem_limit, act_dtype = _tpu_config()

    # Hoisted to XLA: g_emb = tanh(raw_global @ Wg^T + bg); fold wc in.
    g_emb = jnp.tanh(raw_global.astype(jnp.float32) @ wg.T + bg)      # (B, D)
    gc = (g_emb * wc.reshape(1, D)).astype(jnp.float32)               # (B, D)

    wl_t = wl.T.astype(jnp.bfloat16)                                  # (D, D)
    bl2 = bl.reshape(1, D).astype(jnp.float32)

    # Pad L to a sublane multiple so the in-kernel (tb,L,D)->(tb*L,D) reshape
    # stays tile-aligned; padded words are masked out of the softmax.
    Lp = -(-L // 8) * 8
    tb = _choose_batch_tile(B, Lp, D, budget) if batch_tile is None else batch_tile
    nb = pl.cdiv(B, tb)
    Bp = nb * tb

    local_p = local.astype(jnp.bfloat16)                              # bf16 HBM stream
    if (Bp, Lp) != (B, L):
        local_p = jnp.pad(local_p, ((0, Bp - B), (0, Lp - L), (0, 0)))
    gc_p = jnp.pad(gc, ((0, Bp - B), (0, 0))) if Bp != B else gc

    out_shapes = (jax.ShapeDtypeStruct((Bp, D), jnp.float32),
                  jax.ShapeDtypeStruct((Bp, Lp), jnp.float32))

    cost = pl.CostEstimate(
        flops=2 * Bp * Lp * D * D + 8 * Bp * Lp * D,
        transcendentals=Bp * Lp * D + Bp * Lp + Bp,
        bytes_accessed=(Bp * Lp * D * 2 + Bp * D * 4 + D * D * 2 + D * 4
                        + Bp * D * 4 + Bp * Lp * 4))

    kernel = partial(sa_kernel, l_valid=L, act_dtype=act_dtype)

    new_global, weights = pl.pallas_call(
        kernel,
        out_shape=out_shapes,
        grid_spec=pltpu.PrefetchScalarGridSpec(
            num_scalar_prefetch=0,
            grid=(nb,),
            in_specs=[
                pl.BlockSpec((tb, Lp, D), lambda b: (b, 0, 0)),   # local (bf16)
                pl.BlockSpec((tb, D),     lambda b: (b, 0)),      # gc = g_emb*wc
                pl.BlockSpec((D, D),      lambda b: (0, 0)),      # Wl^T (bf16)
                pl.BlockSpec((1, D),      lambda b: (0, 0)),      # bl
            ],
            out_specs=[
                pl.BlockSpec((tb, D),  lambda b: (b, 0)),         # new_global
                pl.BlockSpec((tb, Lp), lambda b: (b, 0)),         # weights
            ],
        ),
        compiler_params=pltpu.CompilerParams(
            dimension_semantics=("parallel",),
            vmem_limit_bytes=vmem_limit),
        cost_estimate=cost,
    )(local_p, gc_p, wl_t, bl2)

    return new_global[:B], weights[:B, :L]


def init_params(key, embed_dim):
    # Matches SA.init_weights: uniform(-r, r) for weights, zeros for biases.
    k1, k2, k3 = jax.random.split(key, 3)
    r_dd = np.sqrt(6.0) / np.sqrt(embed_dim + embed_dim)
    r_d1 = np.sqrt(6.0) / np.sqrt(embed_dim + 1)
    wl = jax.random.uniform(k1, (embed_dim, embed_dim), jnp.float32, -r_dd, r_dd)
    bl = jnp.zeros((embed_dim,), jnp.float32)
    wg = jax.random.uniform(k2, (embed_dim, embed_dim), jnp.float32, -r_dd, r_dd)
    bg = jnp.zeros((embed_dim,), jnp.float32)
    wc = jax.random.uniform(k3, (1, embed_dim), jnp.float32, -r_d1, r_d1)
    bc = jnp.zeros((1,), jnp.float32)
    return (wl, bl, wg, bg, wc, bc)


def sa_reference(local, raw_global, params):
    # Pure-JAX (f32) reference of the PyTorch forward (dropout = identity).
    wl, bl, wg, bg, wc, bc = params
    l_emb = jnp.tanh(local @ wl.T + bl)                         # (B, L, D)
    g_emb = jnp.tanh(raw_global @ wg.T + bg)[:, None, :]        # (B, 1, D)
    common = l_emb * g_emb
    weights = common @ wc.T + bc                                # (B, L, 1)
    weights = jax.nn.softmax(weights[..., 0], axis=1)           # (B, L)
    new_global = jnp.sum(weights[..., None] * local, axis=1)    # (B, D)
    norm = jnp.sqrt(jnp.sum(new_global ** 2, axis=-1, keepdims=True)) + 1e-8
    return new_global / norm, weights


if __name__ == "__main__":
    B, L, D = 2, 8, 32
    key = jax.random.PRNGKey(0)
    k_local, k_global, k_params = jax.random.split(key, 3)
    local = jax.random.normal(k_local, (B, L, D), jnp.float32)
    raw_global = jax.random.normal(k_global, (B, D), jnp.float32)
    params = init_params(k_params, D)

    ng, w = sa_forward(local, raw_global, params)
    jax.block_until_ready((ng, w))

    ng_ref, w_ref = sa_reference(local, raw_global, params)
    assert ng.shape == (B, D) and w.shape == (B, L)
    # bf16 local / Wl on the MXU path -> ~1e-3-level error; 2e-2 tolerance.
    np.testing.assert_allclose(np.asarray(ng), np.asarray(ng_ref), rtol=2e-2, atol=2e-2)
    np.testing.assert_allclose(np.asarray(w), np.asarray(w_ref), rtol=2e-2, atol=2e-2)
    print("KERNEL_OK")
</pallas_src>

<mosaic_0001>
module attributes {stable_mosaic.version = 11 : i64} {
  func.func @sa_kernel(%arg0: i32, %arg1: memref<8x8x32xbf16, #tpu.memory_space<vmem>>, %arg2: memref<8x32xf32, #tpu.memory_space<vmem>>, %arg3: memref<32x32xbf16, #tpu.memory_space<vmem>>, %arg4: memref<1x32xf32, #tpu.memory_space<vmem>>, %arg5: memref<8x32xf32, #tpu.memory_space<vmem>>, %arg6: memref<8x8xf32, #tpu.memory_space<vmem>>) attributes {dimension_semantics = [#tpu.dimension_semantics<parallel>], iteration_bounds = array<i64: 1>, scalar_prefetch = 0 : i64, scratch_operands = 0 : i64, tpu.core_type = #tpu.core_type<tc>, window_params = [{transform_indices = @transform_0, window_bounds = array<i64: 8, 8, 32>}, {transform_indices = @transform_1, window_bounds = array<i64: 8, 32>}, {pipeline_mode = #tpu.pipeline_mode<synchronous>, transform_indices = @transform_2, window_bounds = array<i64: 32, 32>}, {pipeline_mode = #tpu.pipeline_mode<synchronous>, transform_indices = @transform_3, window_bounds = array<i64: 1, 32>}, {transform_indices = @transform_4, window_bounds = array<i64: 8, 32>}, {transform_indices = @transform_5, window_bounds = array<i64: 8, 8>}]} {
    %c0 = arith.constant 0 : index
    %c0_0 = arith.constant 0 : index
    %c0_1 = arith.constant 0 : index
    %0 = vector.load %arg1[%c0, %c0_0, %c0_1] : memref<8x8x32xbf16, #tpu.memory_space<vmem>>, vector<8x8x32xbf16>
    %1 = vector.shape_cast %0 : vector<8x8x32xbf16> to vector<64x32xbf16>
    %c0_2 = arith.constant 0 : index
    %c0_3 = arith.constant 0 : index
    %2 = vector.load %arg3[%c0_2, %c0_3] : memref<32x32xbf16, #tpu.memory_space<vmem>>, vector<32x32xbf16>
    %cst = arith.constant dense<0.000000e+00> : vector<64x32xf32>
    %3 = tpu.matmul %1, %2, %cst {dimension_numbers = #tpu.dot_dimension_numbers<[1], [0], [0], [1], [0, 0, 1, 1], [], []>} : vector<64x32xbf16>, vector<32x32xbf16>, vector<64x32xf32> -> vector<64x32xf32>
    %c0_4 = arith.constant 0 : index
    %c0_5 = arith.constant 0 : index
    %4 = vector.load %arg4[%c0_4, %c0_5] : memref<1x32xf32, #tpu.memory_space<vmem>>, vector<1x32xf32>
    %5 = vector.broadcast %4 : vector<1x32xf32> to vector<64x32xf32>
    %6 = arith.addf %3, %5 : vector<64x32xf32>
    %7 = arith.truncf %6 : vector<64x32xf32> to vector<64x32xbf16>
    %8 = math.tanh %7 : vector<64x32xbf16>
    %9 = vector.shape_cast %8 : vector<64x32xbf16> to vector<8x8x32xbf16>
    %c0_6 = arith.constant 0 : index
    %c0_7 = arith.constant 0 : index
    %10 = vector.load %arg2[%c0_6, %c0_7] : memref<8x32xf32, #tpu.memory_space<vmem>>, vector<8x32xf32>
    %11 = vector.shape_cast %10 : vector<8x32xf32> to vector<8x1x32xf32>
    %12 = arith.extf %9 : vector<8x8x32xbf16> to vector<8x8x32xf32>
    %13 = vector.broadcast %11 : vector<8x1x32xf32> to vector<8x8x32xf32>
    %14 = arith.mulf %12, %13 : vector<8x8x32xf32>
    %cst_8 = arith.constant dense<0.000000e+00> : vector<8x8xf32>
    %15 = vector.multi_reduction <add>, %14, %cst_8 [2] : vector<8x8x32xf32> to vector<8x8xf32>
    %cst_9 = arith.constant dense<0xFF800000> : vector<8xf32>
    %16 = vector.multi_reduction <maximumf>, %15, %cst_9 [1] : vector<8x8xf32> to vector<8xf32>
    %17 = vector.shape_cast %16 : vector<8xf32> to vector<8x1xf32>
    %18 = vector.broadcast %17 : vector<8x1xf32> to vector<8x8xf32>
    %19 = arith.subf %15, %18 : vector<8x8xf32>
    %20 = math.exp %19 : vector<8x8xf32>
    %cst_10 = arith.constant dense<0.000000e+00> : vector<8xf32>
    %21 = vector.multi_reduction <add>, %20, %cst_10 [1] : vector<8x8xf32> to vector<8xf32>
    %22 = vector.shape_cast %21 : vector<8xf32> to vector<8x1xf32>
    %23 = vector.broadcast %22 : vector<8x1xf32> to vector<8x8xf32>
    %24 = arith.divf %20, %23 : vector<8x8xf32>
    %25 = vector.shape_cast %24 : vector<8x8xf32> to vector<8x8x1xf32>
    %26 = arith.extf %0 : vector<8x8x32xbf16> to vector<8x8x32xf32>
    %27 = vector.broadcast %25 : vector<8x8x1xf32> to vector<8x8x32xf32>
    %28 = arith.mulf %27, %26 : vector<8x8x32xf32>
    %cst_11 = arith.constant dense<0.000000e+00> : vector<8x32xf32>
    %29 = vector.multi_reduction <add>, %28, %cst_11 [1] : vector<8x8x32xf32> to vector<8x32xf32>
    %30 = arith.mulf %29, %29 : vector<8x32xf32>
    %cst_12 = arith.constant dense<0.000000e+00> : vector<8xf32>
    %31 = vector.multi_reduction <add>, %30, %cst_12 [1] : vector<8x32xf32> to vector<8xf32>
    %32 = vector.shape_cast %31 : vector<8xf32> to vector<8x1xf32>
    %33 = math.sqrt %32 : vector<8x1xf32>
    %cst_13 = arith.constant 9.99999993E-9 : f32
    %34 = vector.broadcast %cst_13 : f32 to vector<8x1xf32>
    %35 = arith.addf %33, %34 : vector<8x1xf32>
    %36 = vector.broadcast %35 : vector<8x1xf32> to vector<8x32xf32>
    %37 = arith.divf %29, %36 : vector<8x32xf32>
    %c0_14 = arith.constant 0 : index
    %c0_15 = arith.constant 0 : index
    %38 = vector.load %arg5[%c0_14, %c0_15] : memref<8x32xf32, #tpu.memory_space<vmem>>, vector<8x32xf32>
    tpu.vector_store %arg5[%c0_14, %c0_15], %37 {strides = array<i32>} : memref<8x32xf32, #tpu.memory_space<vmem>>, vector<8x32xf32>,
    %c0_16 = arith.constant 0 : index
    %c0_17 = arith.constant 0 : index
    %39 = vector.load %arg6[%c0_16, %c0_17] : memref<8x8xf32, #tpu.memory_space<vmem>>, vector<8x8xf32>
    tpu.vector_store %arg6[%c0_16, %c0_17], %24 {strides = array<i32>} : memref<8x8xf32, #tpu.memory_space<vmem>>, vector<8x8xf32>,
    return
  }
  func.func @transform_0(%arg0: i32) -> (i32, i32, i32) {
    %c0_i32 = arith.constant 0 : i32
    %c0_i32_0 = arith.constant 0 : i32
    %c0_i32_1 = arith.constant 0 : i32
    return %arg0, %c0_i32, %c0_i32_0 : i32, i32, i32
  }
  func.func @transform_1(%arg0: i32) -> (i32, i32) {
    %c0_i32 = arith.constant 0 : i32
    %c0_i32_0 = arith.constant 0 : i32
    return %arg0, %c0_i32 : i32, i32
  }
  func.func @transform_2(%arg0: i32) -> (i32, i32) {
    %c0_i32 = arith.constant 0 : i32
    %c0_i32_0 = arith.constant 0 : i32
    %c0_i32_1 = arith.constant 0 : i32
    return %c0_i32, %c0_i32_0 : i32, i32
  }
  func.func @transform_3(%arg0: i32) -> (i32, i32) {
    %c0_i32 = arith.constant 0 : i32
    %c0_i32_0 = arith.constant 0 : i32
    %c0_i32_1 = arith.constant 0 : i32
    return %c0_i32, %c0_i32_0 : i32, i32
  }
  func.func @transform_4(%arg0: i32) -> (i32, i32) {
    %c0_i32 = arith.constant 0 : i32
    %c0_i32_0 = arith.constant 0 : i32
    return %arg0, %c0_i32 : i32, i32
  }
  func.func @transform_5(%arg0: i32) -> (i32, i32) {
    %c0_i32 = arith.constant 0 : i32
    %c0_i32_0 = arith.constant 0 : i32
    return %arg0, %c0_i32 : i32, i32
  }
}

</mosaic_0001>

<llo_original>
// kernel: tpu_custom_call.1
$region0: #{tpu_custom_call.1}
  #allocation0 [shape = 'u32[]', space=smem, size = 0x4, offset = 0x4, fixed_abs, tag = 'smem constant byte address 0x4 - core index']
  #allocation1 [shape = 'u32[72,128]{1,0:T(1,128)}', space=vmem, size = 0x9000, scoped, tag = 'internal scratch']
  %s0 = inlined_call_operand.hbm [shape: bf16[8,8,32], index: 0, kind: input, shape index: {}]
  %s1 = inlined_call_operand.hbm [shape: f32[8,32], index: 1, kind: input, shape index: {}]
  %s2 = inlined_call_operand.hbm [shape: bf16[32,32], index: 2, kind: input, shape index: {}]
  %s3 = inlined_call_operand.vmem [shape: f32[1,32], index: 3, kind: input, shape index: {}]
  %s4 = inlined_call_operand.hbm [shape: f32[8,32], index: 4, kind: output, shape index: {0}]
  %s5 = inlined_call_operand.hbm [shape: f32[8,8], index: 5, kind: output, shape index: {1}]
  %6 = xla_tuple %s4, %s5
  %s7 = sld [smem:[#allocation0]]
  $region46: #{tpu_custom_call.1} parent=0
    _
  %s9 = ssub.s32 1, %s7
  %s10 = scalar_select 0, %s9, %s7
  $region1: #{tpu_custom_call.1} parent=0
    #allocation2 [shape = 'u8[16384]{0}', space=vmem, size = 0x4000, scoped, tag = 'input window, operand 0, single buffered']
    #allocation3 [shape = 's32[1]{0}', space=sflag, size = 0x4, scoped, tag = 'scoped memory for tpu_custom_call.1']
    #allocation4 [shape = 's32[1]{0}', space=sflag, size = 0x4, scoped, tag = 'scoped memory for tpu_custom_call.1']
    #allocation5 [shape = 'u8[4096]{0}', space=vmem, size = 0x1000, scoped, tag = 'input window, operand 1, single buffered']
    #allocation6 [shape = 's32[1]{0}', space=sflag, size = 0x4, scoped, tag = 'scoped memory for tpu_custom_call.1']
    #allocation7 [shape = 'u8[8192]{0}', space=vmem, size = 0x2000, scoped, tag = 'input window, operand 2, single buffered']
    #allocation8 [shape = 'u8[4096]{0}', space=vmem, size = 0x1000, scoped, tag = 'output window, operand 0, single buffered']
    #allocation9 [shape = 'u8[4096]{0}', space=vmem, size = 0x1000, scoped, tag = 'output window, operand 1, single buffered']
    #allocation10 [shape = 's32[1]{0}', space=sflag, size = 0x4, scoped, tag = 'scoped memory for tpu_custom_call.1']
    %11 = vsyncpa [#allocation3], 0
    %12 = vsyncpa [#allocation6], 0
    %13 = vsyncpa [#allocation4], 0
    %14 = vsyncpa [#allocation10], 0
    // Predicated region
    $region2: #{tpu_custom_call.1} parent=1 // pred_check
      _
    $region3: #{tpu_custom_call.1} parent=1 // pred_check_branch
      %16 = sbr.rel (0) target = $region5
    $region4: #{tpu_custom_call.1} parent=1 // pred_region
      %18 = vsyncadd [#allocation3], 0
      %s19 = sshll.u32 %s0, 4
      %s20 = int_to_ptr.hbm [resolvable:$true] %s19
      %s21 = sshll.u32 [#allocation2], 4
      %s22 = int_to_ptr.vmem [resolvable:$true] %s21
      %27 = dma.hbm_to_vmem [thread:$0]  %s20, 512, %s22, [#allocation3], 64, 64, 4
    $region5: #{tpu_custom_call.1} parent=1 // pred_fallthru
      _
    // Predicated region
    $region6: #{tpu_custom_call.1} parent=1 // pred_check
      _
    $region7: #{tpu_custom_call.1} parent=1 // pred_check_branch
      %29 = sbr.rel (0) target = $region9
    $region8: #{tpu_custom_call.1} parent=1 // pred_region
      %31 = vsyncadd [#allocation6], 0
      %s33 = sshll.u32 %s1, 4
      %s34 = int_to_ptr.hbm [resolvable:$true] %s33
      %s35 = sshll.u32 [#allocation5], 4
      %s36 = int_to_ptr.vmem [resolvable:$true] %s35
      %38 = dma.hbm_to_vmem [thread:$0]  %s34, 128, %s36, [#allocation6]
    $region9: #{tpu_custom_call.1} parent=1 // pred_fallthru
      _
    // Predicated region
    $region10: #{tpu_custom_call.1} parent=1 // pred_check
      _
    $region11: #{tpu_custom_call.1} parent=1 // pred_check_branch
      %40 = sbr.rel (0) target = $region13
    $region12: #{tpu_custom_call.1} parent=1 // pred_region
      %42 = vsyncadd [#allocation6], 0
      %s43 = sshll.u32 %s2, 4
      %s44 = int_to_ptr.hbm [resolvable:$true] %s43
      %s45 = sshll.u32 [#allocation7], 4
      %s46 = int_to_ptr.vmem [resolvable:$true] %s45
      %51 = dma.hbm_to_vmem [thread:$0]  %s44, 256, %s46, [#allocation6], 64, 64, 4
    $region13: #{tpu_custom_call.1} parent=1 // pred_fallthru
      _
    // Predicated region
    $region14: #{tpu_custom_call.1} parent=1 // pred_check
      _
    $region15: #{tpu_custom_call.1} parent=1 // pred_check_branch
      %53 = sbr.rel (0) target = $region17
    $region16: #{tpu_custom_call.1} parent=1 // pred_region
      _
    $region17: #{tpu_custom_call.1} parent=1 // pred_fallthru
      _
    // Predicated region
    $region18: #{tpu_custom_call.1} parent=1 // pred_check
      _
    $region19: #{tpu_custom_call.1} parent=1 // pred_check_branch
      %55 = sbr.rel (0) target = $region21
    $region20: #{tpu_custom_call.1} parent=1 // pred_region
      %57 = dma.done [#allocation3], 512
    $region21: #{tpu_custom_call.1} parent=1 // pred_fallthru
      _
    // Predicated region
    $region22: #{tpu_custom_call.1} parent=1 // pred_check
      _
    $region23: #{tpu_custom_call.1} parent=1 // pred_check_branch
      %59 = sbr.rel (0) target = $region25
    $region24: #{tpu_custom_call.1} parent=1 // pred_region
      %61 = dma.done [#allocation6], 128
    $region25: #{tpu_custom_call.1} parent=1 // pred_fallthru
      _
    // Predicated region
    $region26: #{tpu_custom_call.1} parent=1 // pred_check
      _
    $region27: #{tpu_custom_call.1} parent=1 // pred_check_branch
      %63 = sbr.rel (0) target = $region29
    $region28: #{tpu_custom_call.1} parent=1 // pred_region
      %65 = dma.done [#allocation6], 256
    $region29: #{tpu_custom_call.1} parent=1 // pred_fallthru
      _
    %v67 = vld [vmem:[#allocation2] sm:$0xf]
    %v68 = vld [vmem:[#allocation2 + $0x4] sm:$0xf]
    %v69 = vld [vmem:[#allocation2 + $0x8] sm:$0xf]
    %v70 = vld [vmem:[#allocation2 + $0xc] sm:$0xf]
    %v71 = vld [vmem:[#allocation2 + $0x10] sm:$0xf]
    %v72 = vld [vmem:[#allocation2 + $0x14] sm:$0xf]
    %v73 = vld [vmem:[#allocation2 + $0x18] sm:$0xf]
    %v74 = vld [vmem:[#allocation2 + $0x1c] sm:$0xf]
    %v75 = vld [vmem:[#allocation7] sm:$0xf]
    %v76 = vld [vmem:[#allocation7 + $0x4] sm:$0xf]
    %v77 = vld [vmem:[#allocation7 + $0x8] sm:$0xf]
    %v78 = vld [vmem:[#allocation7 + $0xc] sm:$0xf]
    %v79 = vld [vmem:[%s3] sm:$0x1]
    %v81 = vperm.slane %v79, 0
    %v91 = vunpack.c.l.b16 %v67
    %v92 = vunpack.c.l.b16 %v68
    %v93 = vunpack.c.l.b16 %v69
    %v94 = vunpack.c.l.b16 %v70
    %v95 = vunpack.c.l.b16 %v71
    %v96 = vunpack.c.l.b16 %v72
    %v97 = vunpack.c.l.b16 %v73
    %v98 = vunpack.c.l.b16 %v74
    %v99 = vpack.c.b16 %v92, %v91
    %v100 = vpack.c.b16 %v94, %v93
    %v101 = vpack.c.b16 %v96, %v95
    %v102 = vpack.c.b16 %v98, %v97
    %v107 = vunpack.c.l.b16 %v75
    %v108 = vunpack.c.l.b16 %v76
    %v109 = vunpack.c.l.b16 %v77
    %v110 = vunpack.c.l.b16 %v78
    %v111 = vpack.c.b16 %v108, %v107
    %v112 = vpack.c.b16 %v110, %v109
    %vm115 = vcmask 261120
    %v117 = vsel %vm115, %v99, 0
    %v120 = vsel %vm115, %v100, 0
    %v123 = vsel %vm115, %v101, 0
    %v126 = vsel %vm115, %v102, 0
    %128 = vmatpush.bf16.msra.mxu0 0
    %129 = vmatpush.bf16.msra.mxu0 0
    %130 = vmatpush.bf16.msra.mxu0 0
    %131 = vmatpush.bf16.msra.mxu0 0
    %132 = vmatpush.bf16.msra.mxu0 0
    %133 = vmatpush.bf16.msra.mxu0 0
    %134 = vmatpush.bf16.msra.mxu0 %v112
    %135 = vmatpush.bf16.msra.mxu0 %v111
    %136 = vmatmul.bf16.gmra.mxu0 %v117
    %v137 = vpop.f32.mrf.mxu0
    %v138 = vadd.f32 %v81, %v137
    %v139 = vpop.f32.mrf.mxu0
    %v140 = vadd.f32 %v81, %v139
    %141 = vmatmul.bf16.gmra.mxu0 %v120
    %v142 = vpop.f32.mrf.mxu0
    %v143 = vadd.f32 %v81, %v142
    %v144 = vpop.f32.mrf.mxu0
    %v145 = vadd.f32 %v81, %v144
    %146 = vmatmul.bf16.gmra.mxu0 %v123
    %v147 = vpop.f32.mrf.mxu0
    %v148 = vadd.f32 %v81, %v147
    %v149 = vpop.f32.mrf.mxu0
    %v150 = vadd.f32 %v81, %v149
    %151 = vmatmul.bf16.gmra.mxu0 %v126
    %v152 = vpop.f32.mrf.mxu0
    %v153 = vadd.f32 %v81, %v152
    %v154 = vpop.f32.mrf.mxu0
    %v155 = vadd.f32 %v81, %v154
    %156 = vdwg.mxu0
    %v157 = vpack.c.bf16 %v138, %v138
    %v158 = vpack.c.bf16 %v140, %v140
    %v159 = vpack.c.bf16 %v143, %v143
    %v160 = vpack.c.bf16 %v145, %v145
    %v161 = vpack.c.bf16 %v148, %v148
    %v162 = vpack.c.bf16 %v150, %v150
    %v163 = vpack.c.bf16 %v153, %v153
    %v164 = vpack.c.bf16 %v155, %v155
    %v165 = vunpack.c.l.bf16 %v157
    %v166 = vunpack.c.l.bf16 %v158
    %v167 = vunpack.c.l.bf16 %v159
    %v168 = vunpack.c.l.bf16 %v160
    %v169 = vunpack.c.l.bf16 %v161
    %v170 = vunpack.c.l.bf16 %v162
    %v171 = vunpack.c.l.bf16 %v163
    %v172 = vunpack.c.l.bf16 %v164
    %v173 = vtanh.pop %v165
    %v174 = vtanh.pop %v166
    %v175 = vtanh.pop %v167
    %v176 = vtanh.pop %v168
    %v177 = vtanh.pop %v169
    %v178 = vtanh.pop %v170
    %v179 = vtanh.pop %v171
    %v180 = vtanh.pop %v172
    %v181 = vpack.c.bf16 %v173, %v173
    %v182 = vpack.c.bf16 %v174, %v174
    %v183 = vpack.c.bf16 %v175, %v175
    %v184 = vpack.c.bf16 %v176, %v176
    %v185 = vpack.c.bf16 %v177, %v177
    %v186 = vpack.c.bf16 %v178, %v178
    %v187 = vpack.c.bf16 %v179, %v179
    %v188 = vpack.c.bf16 %v180, %v180
    %v189 = vld [vmem:[#allocation5] sm:$0xff]
    %v191 = vrot.slane %v189, 1
    %v192 = vrot.slane %v189, 2
    %v193 = vrot.slane %v189, 3
    %v194 = vrot.slane %v189, 4
    %v195 = vrot.slane %v189, 5
    %v196 = vrot.slane %v189, 6
    %v197 = vrot.slane %v189, 7
    %v198 = vunpack.c.l.bf16 %v181
    %v199 = vunpack.c.l.bf16 %v182
    %v200 = vunpack.c.l.bf16 %v183
    %v201 = vunpack.c.l.bf16 %v184
    %v202 = vunpack.c.l.bf16 %v185
    %v203 = vunpack.c.l.bf16 %v186
    %v204 = vunpack.c.l.bf16 %v187
    %v205 = vunpack.c.l.bf16 %v188
    %v206 = vperm.slane %v189, 0
    %v207 = vperm.slane %v191, 0
    %v208 = vperm.slane %v192, 0
    %v209 = vperm.slane %v193, 0
    %v210 = vperm.slane %v194, 0
    %v211 = vperm.slane %v195, 0
    %v212 = vperm.slane %v196, 0
    %v213 = vperm.slane %v197, 0
    %v222 = vmul.f32 %v198, %v206
    %v223 = vmul.f32 %v199, %v207
    %v224 = vmul.f32 %v200, %v208
    %v225 = vmul.f32 %v201, %v209
    %v226 = vmul.f32 %v202, %v210
    %v227 = vmul.f32 %v203, %v211
    %v228 = vmul.f32 %v204, %v212
    %v229 = vmul.f32 %v205, %v213
    %v230 = vsel %vm115, %v222, 0.0
    %231 = vadd.xlane.f32.xlu0 %v230
    %v232 = vpop.xlane.xlu0 %231
    %v233 = vsel %vm115, %v223, 0.0
    %234 = vadd.xlane.f32.xlu0 %v233
    %v235 = vpop.xlane.xlu0 %234
    %v236 = vsel %vm115, %v224, 0.0
    %237 = vadd.xlane.f32.xlu0 %v236
    %v238 = vpop.xlane.xlu0 %237
    %v239 = vsel %vm115, %v225, 0.0
    %240 = vadd.xlane.f32.xlu0 %v239
    %v241 = vpop.xlane.xlu0 %240
    %v242 = vsel %vm115, %v226, 0.0
    %243 = vadd.xlane.f32.xlu0 %v242
    %v244 = vpop.xlane.xlu0 %243
    %v245 = vsel %vm115, %v227, 0.0
    %246 = vadd.xlane.f32.xlu0 %v245
    %v247 = vpop.xlane.xlu0 %246
    %v248 = vsel %vm115, %v228, 0.0
    %249 = vadd.xlane.f32.xlu0 %v248
    %v250 = vpop.xlane.xlu0 %249
    %v251 = vsel %vm115, %v229, 0.0
    %252 = vadd.xlane.f32.xlu0 %v251
    %v253 = vpop.xlane.xlu0 %252
    %v262 = vlaneseq
    %v263 = vand.u32 %v262, 127
    %v264 = vperm.slane %v232, %v263
    %v265 = vperm.slane %v235, %v263
    %v266 = vperm.slane %v238, %v263
    %v267 = vperm.slane %v241, %v263
    %v268 = vperm.slane %v244, %v263
    %v269 = vperm.slane %v247, %v263
    %v270 = vperm.slane %v250, %v263
    %v271 = vperm.slane %v253, %v263
    %vm272 = vcmask 1041409
    %v273 = vsel %vm272, %v265, %v264
    %vm274 = vcmask 1042434
    %v275 = vsel %vm274, %v266, %v273
    %vm276 = vcmask 1043459
    %v277 = vsel %vm276, %v267, %v275
    %vm278 = vcmask 1044484
    %v279 = vsel %vm278, %v268, %v277
    %vm280 = vcmask 1045509
    %v281 = vsel %vm280, %v269, %v279
    %vm282 = vcmask 1046534
    %v283 = vsel %vm282, %v270, %v281
    %vm284 = vcmask 1047559
    %v285 = vsel %vm284, %v271, %v283
    %vm287 = vcmask 64512
    %v288 = vsel %vm287, %v285, -inf
    %289 = vmax.xlane.f32.xlu0 %v288
    %v290 = vpop.xlane.xlu0 %289
    %v292 = vperm.slane %v290, 0
    %v293 = vperm.slane %v290, 1
    %v294 = vperm.slane %v290, 2
    %v295 = vperm.slane %v290, 3
    %v296 = vperm.slane %v290, 4
    %v297 = vperm.slane %v290, 5
    %v298 = vperm.slane %v290, 6
    %v299 = vperm.slane %v290, 7
    %v308 = vsub.f32 %v232, %v292
    %v309 = vsub.f32 %v235, %v293
    %v310 = vsub.f32 %v238, %v294
    %v311 = vsub.f32 %v241, %v295
    %v312 = vsub.f32 %v244, %v296
    %v313 = vsub.f32 %v247, %v297
    %v314 = vsub.f32 %v250, %v298
    %v315 = vsub.f32 %v253, %v299
    %v316 = vmul.f32 %v308, 1.442695
    %v317 = vpow.pop %v316
    %v318 = vmul.f32 %v309, 1.442695
    %v319 = vpow.pop %v318
    %v320 = vmul.f32 %v310, 1.442695
    %v321 = vpow.pop %v320
    %v322 = vmul.f32 %v311, 1.442695
    %v323 = vpow.pop %v322
    %v324 = vmul.f32 %v312, 1.442695
    %v325 = vpow.pop %v324
    %v326 = vmul.f32 %v313, 1.442695
    %v327 = vpow.pop %v326
    %v328 = vmul.f32 %v314, 1.442695
    %v329 = vpow.pop %v328
    %v330 = vmul.f32 %v315, 1.442695
    %v331 = vpow.pop %v330
    %340 = vset.pattern.permute.xlu0 0
    %341 = vperm.xlu0 %340, %v317
    %v342 = vpop.permute.xlu0 %341
    %343 = vset.pattern.permute.xlu0 0
    %344 = vperm.xlu0 %343, %v319
    %v345 = vpop.permute.xlu0 %344
    %346 = vset.pattern.permute.xlu0 0
    %347 = vperm.xlu0 %346, %v321
    %v348 = vpop.permute.xlu0 %347
    %349 = vset.pattern.permute.xlu0 0
    %350 = vperm.xlu0 %349, %v323
    %v351 = vpop.permute.xlu0 %350
    %352 = vset.pattern.permute.xlu0 0
    %353 = vperm.xlu0 %352, %v325
    %v354 = vpop.permute.xlu0 %353
    %355 = vset.pattern.permute.xlu0 0
    %356 = vperm.xlu0 %355, %v327
    %v357 = vpop.permute.xlu0 %356
    %358 = vset.pattern.permute.xlu0 0
    %359 = vperm.xlu0 %358, %v329
    %v360 = vpop.permute.xlu0 %359
    %361 = vset.pattern.permute.xlu0 0
    %362 = vperm.xlu0 %361, %v331
    %v363 = vpop.permute.xlu0 %362
    %v364 = vperm.slane %v342, %v263
    %v365 = vperm.slane %v345, %v263
    %v366 = vperm.slane %v348, %v263
    %v367 = vperm.slane %v351, %v263
    %v368 = vperm.slane %v354, %v263
    %v369 = vperm.slane %v357, %v263
    %v370 = vperm.slane %v360, %v263
    %v371 = vperm.slane %v363, %v263
    %v372 = vsel %vm272, %v365, %v364
    %v373 = vsel %vm274, %v366, %v372
    %v374 = vsel %vm276, %v367, %v373
    %v375 = vsel %vm278, %v368, %v374
    %v376 = vsel %vm280, %v369, %v375
    %v377 = vsel %vm282, %v370, %v376
    %v378 = vsel %vm284, %v371, %v377
    %v380 = vsel %vm287, %v378, 0.0
    %381 = vadd.xlane.f32.xlu0 %v380
    %v382 = vpop.xlane.xlu0 %381
    %v384 = vperm.slane %v382, 0
    %v385 = vperm.slane %v382, 1
    %v386 = vperm.slane %v382, 2
    %v387 = vperm.slane %v382, 3
    %v388 = vperm.slane %v382, 4
    %v389 = vperm.slane %v382, 5
    %v390 = vperm.slane %v382, 6
    %v391 = vperm.slane %v382, 7
    %v400 = vrcp.pop %v384
    %v401 = vmul.f32 %v384, %v400
    %v402 = vsub.f32 1.0, %v401
    %v403 = vmul.f32 %v400, %v402
    %v404 = vadd.f32 %v400, %v403
    %vm405 = vweird.f32 %v384
    %vm406 = vweird.f32 %v400
    %vm407 = vmor %vm405, %vm406
    %v408 = vsel %vm407, %v400, %v404
    %v409 = vand.u32 2147483647, %v384
    %vm410 = vcmp.eq.f32.partialorder %v409, 8.507059e+37
    %v411 = vand.u32 %v384, 2147483648
    %v412 = vor.u32 1.1754944e-38, %v411
    %v413 = vsel %vm410, %v412, %v408
    %v414 = vmul.f32 %v317, %v413
    %v415 = vrcp.pop %v385
    %v416 = vmul.f32 %v385, %v415
    %v417 = vsub.f32 1.0, %v416
    %v418 = vmul.f32 %v415, %v417
    %v419 = vadd.f32 %v415, %v418
    %vm420 = vweird.f32 %v385
    %vm421 = vweird.f32 %v415
    %vm422 = vmor %vm420, %vm421
    %v423 = vsel %vm422, %v415, %v419
    %v424 = vand.u32 2147483647, %v385
    %vm425 = vcmp.eq.f32.partialorder %v424, 8.507059e+37
    %v426 = vand.u32 %v385, 2147483648
    %v427 = vor.u32 1.1754944e-38, %v426
    %v428 = vsel %vm425, %v427, %v423
    %v429 = vmul.f32 %v319, %v428
    %v430 = vrcp.pop %v386
    %v431 = vmul.f32 %v386, %v430
    %v432 = vsub.f32 1.0, %v431
    %v433 = vmul.f32 %v430, %v432
    %v434 = vadd.f32 %v430, %v433
    %vm435 = vweird.f32 %v386
    %vm436 = vweird.f32 %v430
    %vm437 = vmor %vm435, %vm436
    %v438 = vsel %vm437, %v430, %v434
    %v439 = vand.u32 2147483647, %v386
    %vm440 = vcmp.eq.f32.partialorder %v439, 8.507059e+37
    %v441 = vand.u32 %v386, 2147483648
    %v442 = vor.u32 1.1754944e-38, %v441
    %v443 = vsel %vm440, %v442, %v438
    %v444 = vmul.f32 %v321, %v443
    %v445 = vrcp.pop %v387
    %v446 = vmul.f32 %v387, %v445
    %v447 = vsub.f32 1.0, %v446
    %v448 = vmul.f32 %v445, %v447
    %v449 = vadd.f32 %v445, %v448
    %vm450 = vweird.f32 %v387
    %vm451 = vweird.f32 %v445
    %vm452 = vmor %vm450, %vm451
    %v453 = vsel %vm452, %v445, %v449
    %v454 = vand.u32 2147483647, %v387
    %vm455 = vcmp.eq.f32.partialorder %v454, 8.507059e+37
    %v456 = vand.u32 %v387, 2147483648
    %v457 = vor.u32 1.1754944e-38, %v456
    %v458 = vsel %vm455, %v457, %v453
    %v459 = vmul.f32 %v323, %v458
    %v460 = vrcp.pop %v388
    %v461 = vmul.f32 %v388, %v460
    %v462 = vsub.f32 1.0, %v461
    %v463 = vmul.f32 %v460, %v462
    %v464 = vadd.f32 %v460, %v463
    %vm465 = vweird.f32 %v388
    %vm466 = vweird.f32 %v460
    %vm467 = vmor %vm465, %vm466
    %v468 = vsel %vm467, %v460, %v464
    %v469 = vand.u32 2147483647, %v388
    %vm470 = vcmp.eq.f32.partialorder %v469, 8.507059e+37
    %v471 = vand.u32 %v388, 2147483648
    %v472 = vor.u32 1.1754944e-38, %v471
    %v473 = vsel %vm470, %v472, %v468
    %v474 = vmul.f32 %v325, %v473
    %v475 = vrcp.pop %v389
    %v476 = vmul.f32 %v389, %v475
    %v477 = vsub.f32 1.0, %v476
    %v478 = vmul.f32 %v475, %v477
    %v479 = vadd.f32 %v475, %v478
    %vm480 = vweird.f32 %v389
    %vm481 = vweird.f32 %v475
    %vm482 = vmor %vm480, %vm481
    %v483 = vsel %vm482, %v475, %v479
    %v484 = vand.u32 2147483647, %v389
    %vm485 = vcmp.eq.f32.partialorder %v484, 8.507059e+37
    %v486 = vand.u32 %v389, 2147483648
    %v487 = vor.u32 1.1754944e-38, %v486
    %v488 = vsel %vm485, %v487, %v483
    %v489 = vmul.f32 %v327, %v488
    %v490 = vrcp.pop %v390
    %v491 = vmul.f32 %v390, %v490
    %v492 = vsub.f32 1.0, %v491
    %v493 = vmul.f32 %v490, %v492
    %v494 = vadd.f32 %v490, %v493
    %vm495 = vweird.f32 %v390
    %vm496 = vweird.f32 %v490
    %vm497 = vmor %vm495, %vm496
    %v498 = vsel %vm497, %v490, %v494
    %v499 = vand.u32 2147483647, %v390
    %vm500 = vcmp.eq.f32.partialorder %v499, 8.507059e+37
    %v501 = vand.u32 %v390, 2147483648
    %v502 = vor.u32 1.1754944e-38, %v501
    %v503 = vsel %vm500, %v502, %v498
    %v504 = vmul.f32 %v329, %v503
    %v505 = vrcp.pop %v391
    %v506 = vmul.f32 %v391, %v505
    %v507 = vsub.f32 1.0, %v506
    %v508 = vmul.f32 %v505, %v507
    %v509 = vadd.f32 %v505, %v508
    %vm510 = vweird.f32 %v391
    %vm511 = vweird.f32 %v505
    %vm512 = vmor %vm510, %vm511
    %v513 = vsel %vm512, %v505, %v509
    %v514 = vand.u32 2147483647, %v391
    %vm515 = vcmp.eq.f32.partialorder %v514, 8.507059e+37
    %v516 = vand.u32 %v391, 2147483648
    %v517 = vor.u32 1.1754944e-38, %v516
    %v518 = vsel %vm515, %v517, %v513
    %v519 = vmul.f32 %v331, %v518
    %v520 = vunpack.c.l.bf16 %v67
    %v521 = vunpack.c.l.bf16 %v68
    %v522 = vunpack.c.l.bf16 %v69
    %v523 = vunpack.c.l.bf16 %v70
    %v524 = vunpack.c.l.bf16 %v71
    %v525 = vunpack.c.l.bf16 %v72
    %v526 = vunpack.c.l.bf16 %v73
    %v527 = vunpack.c.l.bf16 %v74
    %529 = vset.pattern.permute.xlu0 0
    %530 = vperm.xlu0 %529, %v414
    %v531 = vpop.permute.xlu0 %530
    %534 = vset.pattern.permute.xlu0 0
    %535 = vperm.xlu0 %534, %v429
    %v536 = vpop.permute.xlu0 %535
    %539 = vset.pattern.permute.xlu0 0
    %540 = vperm.xlu0 %539, %v444
    %v541 = vpop.permute.xlu0 %540
    %544 = vset.pattern.permute.xlu0 0
    %545 = vperm.xlu0 %544, %v459
    %v546 = vpop.permute.xlu0 %545
    %549 = vset.pattern.permute.xlu0 0
    %550 = vperm.xlu0 %549, %v474
    %v551 = vpop.permute.xlu0 %550
    %554 = vset.pattern.permute.xlu0 0
    %555 = vperm.xlu0 %554, %v489
    %v556 = vpop.permute.xlu0 %555
    %559 = vset.pattern.permute.xlu0 0
    %560 = vperm.xlu0 %559, %v504
    %v561 = vpop.permute.xlu0 %560
    %564 = vset.pattern.permute.xlu0 0
    %565 = vperm.xlu0 %564, %v519
    %v566 = vpop.permute.xlu0 %565
    %v568 = vmul.f32 %v531, %v520
    %v569 = vmul.f32 %v536, %v521
    %v570 = vmul.f32 %v541, %v522
    %v571 = vmul.f32 %v546, %v523
    %v572 = vmul.f32 %v551, %v524
    %v573 = vmul.f32 %v556, %v525
    %v574 = vmul.f32 %v561, %v526
    %v575 = vmul.f32 %v566, %v527
    %v576 = vsel %vm115, %v568, 0.0
    %v577 = vrot.slane %v576, 4
    %v578 = vadd.f32 %v576, %v577
    %v579 = vrot.slane %v578, 2
    %v580 = vadd.f32 %v578, %v579
    %v581 = vrot.slane %v580, 1
    %v582 = vadd.f32 %v580, %v581
    %v583 = vsel %vm115, %v569, 0.0
    %v584 = vrot.slane %v583, 4
    %v585 = vadd.f32 %v583, %v584
    %v586 = vrot.slane %v585, 2
    %v587 = vadd.f32 %v585, %v586
    %v588 = vrot.slane %v587, 1
    %v589 = vadd.f32 %v587, %v588
    %v590 = vsel %vm115, %v570, 0.0
    %v591 = vrot.slane %v590, 4
    %v592 = vadd.f32 %v590, %v591
    %v593 = vrot.slane %v592, 2
    %v594 = vadd.f32 %v592, %v593
    %v595 = vrot.slane %v594, 1
    %v596 = vadd.f32 %v594, %v595
    %v597 = vsel %vm115, %v571, 0.0
    %v598 = vrot.slane %v597, 4
    %v599 = vadd.f32 %v597, %v598
    %v600 = vrot.slane %v599, 2
    %v601 = vadd.f32 %v599, %v600
    %v602 = vrot.slane %v601, 1
    %v603 = vadd.f32 %v601, %v602
    %v604 = vsel %vm115, %v572, 0.0
    %v605 = vrot.slane %v604, 4
    %v606 = vadd.f32 %v604, %v605
    %v607 = vrot.slane %v606, 2
    %v608 = vadd.f32 %v606, %v607
    %v609 = vrot.slane %v608, 1
    %v610 = vadd.f32 %v608, %v609
    %v611 = vsel %vm115, %v573, 0.0
    %v612 = vrot.slane %v611, 4
    %v613 = vadd.f32 %v611, %v612
    %v614 = vrot.slane %v613, 2
    %v615 = vadd.f32 %v613, %v614
    %v616 = vrot.slane %v615, 1
    %v617 = vadd.f32 %v615, %v616
    %v618 = vsel %vm115, %v574, 0.0
    %v619 = vrot.slane %v618, 4
    %v620 = vadd.f32 %v618, %v619
    %v621 = vrot.slane %v620, 2
    %v622 = vadd.f32 %v620, %v621
    %v623 = vrot.slane %v622, 1
    %v624 = vadd.f32 %v622, %v623
    %v625 = vsel %vm115, %v575, 0.0
    %v626 = vrot.slane %v625, 4
    %v627 = vadd.f32 %v625, %v626
    %v628 = vrot.slane %v627, 2
    %v629 = vadd.f32 %v627, %v628
    %v630 = vrot.slane %v629, 1
    %v631 = vadd.f32 %v629, %v630
    %v632 = vmul.f32 %v582, %v582
    %v633 = vmul.f32 %v589, %v589
    %v634 = vmul.f32 %v596, %v596
    %v635 = vmul.f32 %v603, %v603
    %v636 = vmul.f32 %v610, %v610
    %v637 = vmul.f32 %v617, %v617
    %v638 = vmul.f32 %v624, %v624
    %v639 = vmul.f32 %v631, %v631
    %v648 = vsel %vm272, %v633, %v632
    %v649 = vsel %vm274, %v634, %v648
    %v650 = vsel %vm276, %v635, %v649
    %v651 = vsel %vm278, %v636, %v650
    %v652 = vsel %vm280, %v637, %v651
    %v653 = vsel %vm282, %v638, %v652
    %v654 = vsel %vm284, %v639, %v653
    %v656 = vsel %vm115, %v654, 0.0
    %657 = vadd.xlane.f32.xlu0 %v656
    %v658 = vpop.xlane.xlu0 %657
    %v659 = vrsqrt.pop %v658
    %v660 = vmul.f32 %v659, %v658
    %v661 = vmul.f32 %v660, %v659
    %v662 = vmul.f32 0.5, %v661
    %v663 = vsub.f32 1.5, %v662
    %v664 = vmul.f32 %v659, %v663
    %v665 = vmul.f32 %v658, %v664
    %vm666 = vcmp.eq.f32.partialorder %v658, inf
    %v667 = vsel %vm666, %v658, %v665
    %vm668 = vcmp.eq.f32.partialorder %v658, 0.0
    %v669 = vand.u32 %v658, 2147483648
    %v670 = vsel %vm668, %v669, %v667
    %v671 = vadd.f32 %v670, 1e-08
    %v673 = vrot.slane %v671, 1
    %v674 = vrot.slane %v671, 2
    %v675 = vrot.slane %v671, 3
    %v676 = vrot.slane %v671, 4
    %v677 = vrot.slane %v671, 5
    %v678 = vrot.slane %v671, 6
    %v679 = vrot.slane %v671, 7
    %v688 = vrcp.pop %v671
    %v689 = vmul.f32 %v671, %v688
    %v690 = vsub.f32 1.0, %v689
    %v691 = vmul.f32 %v688, %v690
    %v692 = vadd.f32 %v688, %v691
    %vm693 = vweird.f32 %v671
    %vm694 = vweird.f32 %v688
    %vm695 = vmor %vm693, %vm694
    %v696 = vsel %vm695, %v688, %v692
    %v697 = vand.u32 2147483647, %v671
    %vm698 = vcmp.eq.f32.partialorder %v697, 8.507059e+37
    %v699 = vand.u32 %v671, 2147483648
    %v700 = vor.u32 1.1754944e-38, %v699
    %v701 = vsel %vm698, %v700, %v696
    %v702 = vmul.f32 %v582, %v701
    %v703 = vrcp.pop %v673
    %v704 = vmul.f32 %v673, %v703
    %v705 = vsub.f32 1.0, %v704
    %v706 = vmul.f32 %v703, %v705
    %v707 = vadd.f32 %v703, %v706
    %vm708 = vweird.f32 %v673
    %vm709 = vweird.f32 %v703
    %vm710 = vmor %vm708, %vm709
    %v711 = vsel %vm710, %v703, %v707
    %v712 = vand.u32 2147483647, %v673
    %vm713 = vcmp.eq.f32.partialorder %v712, 8.507059e+37
    %v714 = vand.u32 %v673, 2147483648
    %v715 = vor.u32 1.1754944e-38, %v714
    %v716 = vsel %vm713, %v715, %v711
    %v717 = vmul.f32 %v589, %v716
    %v718 = vrcp.pop %v674
    %v719 = vmul.f32 %v674, %v718
    %v720 = vsub.f32 1.0, %v719
    %v721 = vmul.f32 %v718, %v720
    %v722 = vadd.f32 %v718, %v721
    %vm723 = vweird.f32 %v674
    %vm724 = vweird.f32 %v718
    %vm725 = vmor %vm723, %vm724
    %v726 = vsel %vm725, %v718, %v722
    %v727 = vand.u32 2147483647, %v674
    %vm728 = vcmp.eq.f32.partialorder %v727, 8.507059e+37
    %v729 = vand.u32 %v674, 2147483648
    %v730 = vor.u32 1.1754944e-38, %v729
    %v731 = vsel %vm728, %v730, %v726
    %v732 = vmul.f32 %v596, %v731
    %v733 = vrcp.pop %v675
    %v734 = vmul.f32 %v675, %v733
    %v735 = vsub.f32 1.0, %v734
    %v736 = vmul.f32 %v733, %v735
    %v737 = vadd.f32 %v733, %v736
    %vm738 = vweird.f32 %v675
    %vm739 = vweird.f32 %v733
    %vm740 = vmor %vm738, %vm739
    %v741 = vsel %vm740, %v733, %v737
    %v742 = vand.u32 2147483647, %v675
    %vm743 = vcmp.eq.f32.partialorder %v742, 8.507059e+37
    %v744 = vand.u32 %v675, 2147483648
    %v745 = vor.u32 1.1754944e-38, %v744
    %v746 = vsel %vm743, %v745, %v741
    %v747 = vmul.f32 %v603, %v746
    %v748 = vrcp.pop %v676
    %v749 = vmul.f32 %v676, %v748
    %v750 = vsub.f32 1.0, %v749
    %v751 = vmul.f32 %v748, %v750
    %v752 = vadd.f32 %v748, %v751
    %vm753 = vweird.f32 %v676
    %vm754 = vweird.f32 %v748
    %vm755 = vmor %vm753, %vm754
    %v756 = vsel %vm755, %v748, %v752
    %v757 = vand.u32 2147483647, %v676
    %vm758 = vcmp.eq.f32.partialorder %v757, 8.507059e+37
    %v759 = vand.u32 %v676, 2147483648
    %v760 = vor.u32 1.1754944e-38, %v759
    %v761 = vsel %vm758, %v760, %v756
    %v762 = vmul.f32 %v610, %v761
    %v763 = vrcp.pop %v677
    %v764 = vmul.f32 %v677, %v763
    %v765 = vsub.f32 1.0, %v764
    %v766 = vmul.f32 %v763, %v765
    %v767 = vadd.f32 %v763, %v766
    %vm768 = vweird.f32 %v677
    %vm769 = vweird.f32 %v763
    %vm770 = vmor %vm768, %vm769
    %v771 = vsel %vm770, %v763, %v767
    %v772 = vand.u32 2147483647, %v677
    %vm773 = vcmp.eq.f32.partialorder %v772, 8.507059e+37
    %v774 = vand.u32 %v677, 2147483648
    %v775 = vor.u32 1.1754944e-38, %v774
    %v776 = vsel %vm773, %v775, %v771
    %v777 = vmul.f32 %v617, %v776
    %v778 = vrcp.pop %v678
    %v779 = vmul.f32 %v678, %v778
    %v780 = vsub.f32 1.0, %v779
    %v781 = vmul.f32 %v778, %v780
    %v782 = vadd.f32 %v778, %v781
    %vm783 = vweird.f32 %v678
    %vm784 = vweird.f32 %v778
    %vm785 = vmor %vm783, %vm784
    %v786 = vsel %vm785, %v778, %v782
    %v787 = vand.u32 2147483647, %v678
    %vm788 = vcmp.eq.f32.partialorder %v787, 8.507059e+37
    %v789 = vand.u32 %v678, 2147483648
    %v790 = vor.u32 1.1754944e-38, %v789
    %v791 = vsel %vm788, %v790, %v786
    %v792 = vmul.f32 %v624, %v791
    %v793 = vrcp.pop %v679
    %v794 = vmul.f32 %v679, %v793
    %v795 = vsub.f32 1.0, %v794
    %v796 = vmul.f32 %v793, %v795
    %v797 = vadd.f32 %v793, %v796
    %vm798 = vweird.f32 %v679
    %vm799 = vweird.f32 %v793
    %vm800 = vmor %vm798, %vm799
    %v801 = vsel %vm800, %v793, %v797
    %v802 = vand.u32 2147483647, %v679
    %vm803 = vcmp.eq.f32.partialorder %v802, 8.507059e+37
    %v804 = vand.u32 %v679, 2147483648
    %v805 = vor.u32 1.1754944e-38, %v804
    %v806 = vsel %vm803, %v805, %v801
    %v807 = vmul.f32 %v631, %v806
    %v816 = vrot.slane %v717, 7
    %v817 = vsel %vm272, %v816, %v702
    %v818 = vrot.slane %v732, 6
    %v819 = vsel %vm274, %v818, %v817
    %v820 = vrot.slane %v747, 5
    %v821 = vsel %vm276, %v820, %v819
    %v822 = vrot.slane %v762, 4
    %v823 = vsel %vm278, %v822, %v821
    %v824 = vrot.slane %v777, 3
    %v825 = vsel %vm280, %v824, %v823
    %v826 = vrot.slane %v792, 2
    %v827 = vsel %vm282, %v826, %v825
    %v828 = vrot.slane %v807, 1
    %v829 = vsel %vm284, %v828, %v827
    %831 = vst.msk [vmem:[#allocation8] sm:$0xff] %vm115, %v829
    %v832 = vperm.slane %v531, %v263
    %v833 = vperm.slane %v536, %v263
    %v834 = vperm.slane %v541, %v263
    %v835 = vperm.slane %v546, %v263
    %v836 = vperm.slane %v551, %v263
    %v837 = vperm.slane %v556, %v263
    %v838 = vperm.slane %v561, %v263
    %v839 = vperm.slane %v566, %v263
    %v840 = vsel %vm272, %v833, %v832
    %v841 = vsel %vm274, %v834, %v840
    %v842 = vsel %vm276, %v835, %v841
    %v843 = vsel %vm278, %v836, %v842
    %v844 = vsel %vm280, %v837, %v843
    %v845 = vsel %vm282, %v838, %v844
    %v846 = vsel %vm284, %v839, %v845
    %848 = vst.msk [vmem:[#allocation9] sm:$0xff] %vm287, %v846
    // Predicated region
    $region30: #{tpu_custom_call.1} parent=1 // pred_check
      _
    $region31: #{tpu_custom_call.1} parent=1 // pred_check_branch
      %850 = sbr.rel (0) target = $region33
    $region32: #{tpu_custom_call.1} parent=1 // pred_region
      %852 = vsyncadd [#allocation4], 0
      %s854 = sshll.u32 [#allocation8], 4
      %s855 = int_to_ptr.vmem [resolvable:$true] %s854
      %s856 = sshll.u32 %s4, 4
      %s857 = int_to_ptr.hbm [resolvable:$true] %s856
      %859 = dma.vmem_to_hbm [thread:$0]  %s855, 128, %s857, [#allocation4]
    $region33: #{tpu_custom_call.1} parent=1 // pred_fallthru
      _
    // Predicated region
    $region34: #{tpu_custom_call.1} parent=1 // pred_check
      _
    $region35: #{tpu_custom_call.1} parent=1 // pred_check_branch
      %861 = sbr.rel (0) target = $region37
    $region36: #{tpu_custom_call.1} parent=1 // pred_region
      %863 = vsyncadd [#allocation10], 0
      %s865 = sshll.u32 [#allocation9], 4
      %s866 = int_to_ptr.vmem [resolvable:$true] %s865
      %s867 = sshll.u32 %s5, 4
      %s868 = int_to_ptr.hbm [resolvable:$true] %s867
      %870 = dma.vmem_to_hbm [thread:$0]  %s866, 128, %s868, [#allocation10]
    $region37: #{tpu_custom_call.1} parent=1 // pred_fallthru
      _
    // Predicated region
    $region38: #{tpu_custom_call.1} parent=1 // pred_check
      _
    $region39: #{tpu_custom_call.1} parent=1 // pred_check_branch
      %872 = sbr.rel (0) target = $region41
    $region40: #{tpu_custom_call.1} parent=1 // pred_region
      %874 = dma.done [#allocation4], 128
    $region41: #{tpu_custom_call.1} parent=1 // pred_fallthru
      _
    // Predicated region
    $region42: #{tpu_custom_call.1} parent=1 // pred_check
      _
    $region43: #{tpu_custom_call.1} parent=1 // pred_check_branch
      %876 = sbr.rel (0) target = $region45
    $region44: #{tpu_custom_call.1} parent=1 // pred_region
      %878 = dma.done [#allocation10], 128
    $region45: #{tpu_custom_call.1} parent=1 // pred_fallthru
      _
    %879 = vsyncpa [#allocation3], 1
    %880 = vsyncpa [#allocation6], 1
    %881 = vsyncpa [#allocation4], 1
    %882 = vsyncpa [#allocation10], 1

</llo_original>
